<compile_context>
chip_gen: v5e
topology: v5e:2x2
jax: 0.10.0
libtpu: 0.0.40
codegen_flags: <defaults>
</compile_context>

<pallas_src>
import jax
import jax.numpy as jnp
from jax.experimental import pallas as pl
from jax.experimental.pallas import tpu as pltpu


def _round_up(x, m):
    return (x + m - 1) // m * m


# --------------------------------------------------------------------------
# Kernel
# --------------------------------------------------------------------------
def _vd_kernel(x_ref, eps_ref,
               w_in_ref, b_in_ref,
               w_h_ref, b_h_ref,
               w_heads_ref, b_heads_ref,
               w_lvz_ref, b_lvz_ref,
               out_ref):
    latent = eps_ref.shape[1]

    x = x_ref[...]                                                  # (TB, Din) f32

    # ---- Encoder trunk (f32 matmuls, f32 accumulation) ----
    h0 = jnp.dot(x, w_in_ref[...], preferred_element_type=jnp.float32) + b_in_ref[...]
    h0 = jnp.maximum(h0, 0.0)                                       # relu  (VPU)

    h = jnp.dot(h0, w_h_ref[...], preferred_element_type=jnp.float32) + b_h_ref[...]
    h = jnp.tanh(h)                                                 # tanh  (EUP)

    # ---- Fused heads: one (TB, OUTW) matmul whose lane layout is
    #      [ mean | mean | log_var | log_var | 0-pad ]   (each slot `latent` wide)
    heads = (jnp.dot(h, w_heads_ref[...], preferred_element_type=jnp.float32)
             + b_heads_ref[...])

    lane = jax.lax.broadcasted_iota(jnp.int32, heads.shape, 1)
    is_var = (lane >= 2 * latent) & (lane < 3 * latent)
    slab = jnp.where(is_var, jnp.exp(0.5 * heads), heads)
    # slab lane layout: [ mean | mean | var | log_var | 0-pad ]

    # ---- Reparameterization noise at natural latent width (no cross-lane moves).
    log_var_z = (jnp.dot(h, w_lvz_ref[...], preferred_element_type=jnp.float32)
                 + b_lvz_ref[...])                                  # (TB, latent)
    z = heads[:, :latent] + eps_ref[...] * jnp.exp(0.5 * log_var_z)

    # Full lane-dense store (HBM block is a multiple of 128 lanes, unmasked DMA),
    # then patch z into slot 0 with a small masked VMEM store.
    out_ref[...] = slab
    out_ref[:, :latent] = z


# --------------------------------------------------------------------------
# Wrapper
# --------------------------------------------------------------------------
def prepare_params(params):
    """One-time packing of PyTorch-style Linear params into the kernel layout.

    Call this OUTSIDE the jitted forward (hoists the padding / packing copies).
    """
    w_in, b_in = params["w_in"], params["b_in"]
    w_h, b_h = params["w_h"], params["b_h"]
    w_mu, b_mu = params["w_mu"], params["b_mu"]
    w_lv, b_lv = params["w_lv"], params["b_lv"]

    din, dh = w_in.shape
    latent = w_mu.shape[1]
    DH = _round_up(dh, 128)              # lane-pad hidden width -> full-lane activations
    OUTW = _round_up(4 * latent, 128)    # packed [z|mean|var|log_var] slab width

    f32 = jnp.float32
    b_in = jnp.asarray(b_in, f32).reshape(1, -1)
    b_h = jnp.asarray(b_h, f32).reshape(1, -1)
    b_mu = jnp.asarray(b_mu, f32).reshape(1, -1)
    b_lv = jnp.asarray(b_lv, f32).reshape(1, -1)

    w_in_p = jnp.zeros((din, DH), f32).at[:, :dh].set(w_in)
    b_in_p = jnp.zeros((1, DH), f32).at[:, :dh].set(b_in)
    w_h_p = jnp.zeros((DH, DH), f32).at[:dh, :dh].set(w_h)
    b_h_p = jnp.zeros((1, DH), f32).at[:, :dh].set(b_h)

    # Fused heads weight: lane layout [mean | mean | log_var | log_var | 0-pad].
    w_heads = jnp.zeros((DH, OUTW), f32)
    w_heads = w_heads.at[:dh, 0 * latent:1 * latent].set(w_mu)   # z slot base (= mean)
    w_heads = w_heads.at[:dh, 1 * latent:2 * latent].set(w_mu)   # mean slot
    w_heads = w_heads.at[:dh, 2 * latent:3 * latent].set(w_lv)   # -> var = exp(0.5*lv)
    w_heads = w_heads.at[:dh, 3 * latent:4 * latent].set(w_lv)   # log_var slot
    b_heads = jnp.zeros((1, OUTW), f32)
    b_heads = b_heads.at[:, 0 * latent:1 * latent].set(b_mu)
    b_heads = b_heads.at[:, 1 * latent:2 * latent].set(b_mu)
    b_heads = b_heads.at[:, 2 * latent:3 * latent].set(b_lv)
    b_heads = b_heads.at[:, 3 * latent:4 * latent].set(b_lv)

    # Natural-width copy of the log_var head, used only for the z-noise std.
    w_lvz = jnp.zeros((DH, latent), f32).at[:dh].set(w_lv)
    b_lvz = b_lv

    return dict(w_in=w_in_p, b_in=b_in_p, w_h=w_h_p, b_h=b_h_p,
                w_heads=w_heads, b_heads=b_heads, w_lvz=w_lvz, b_lvz=b_lvz)


def _choose_batch_tile(B, block_b):
    tb_full = _round_up(B, 8)
    tb = min(block_b, tb_full)
    # Force >= 2 grid steps for mid-size batches so dimension_semantics=("parallel",)
    # can shard the batch over v7x's two TensorCores (harmless on v5e/v6e).
    if tb == tb_full and B > 8:
        tb = _round_up((B + 1) // 2, 8)
    return tb


def variational_discriminant_forward(x, eps, packed, *, block_b=1024):
    """Forward pass of Variational_discriminant. Returns (z, mean, var, log_var)."""
    x = x.astype(jnp.float32)
    eps = eps.astype(jnp.float32)
    B, Din = x.shape
    latent = eps.shape[1]
    DH = packed["w_in"].shape[1]
    OUTW = packed["w_heads"].shape[1]

    TB = _choose_batch_tile(B, block_b)
    B_pad = _round_up(B, TB)
    if B_pad != B:
        x = jnp.zeros((B_pad, Din), jnp.float32).at[:B].set(x)
        eps = jnp.zeros((B_pad, latent), jnp.float32).at[:B].set(eps)

    grid = (B_pad // TB,)
    batch_map = lambda i: (i, 0)   # tiled over batch (double-buffered by Pallas)
    const_map = lambda i: (0, 0)   # VMEM-resident weights / biases

    slab = pl.pallas_call(
        _vd_kernel,
        out_shape=jax.ShapeDtypeStruct((B_pad, OUTW), jnp.float32),
        grid=grid,
        in_specs=[
            pl.BlockSpec((TB, Din), batch_map),       # x
            pl.BlockSpec((TB, latent), batch_map),    # eps (natural width, no padding)
            pl.BlockSpec((Din, DH), const_map),       # w_in
            pl.BlockSpec((1, DH), const_map),         # b_in
            pl.BlockSpec((DH, DH), const_map),        # w_h
            pl.BlockSpec((1, DH), const_map),         # b_h
            pl.BlockSpec((DH, OUTW), const_map),      # fused heads W
            pl.BlockSpec((1, OUTW), const_map),       # fused heads b
            pl.BlockSpec((DH, latent), const_map),    # w_log_var (natural width, for z)
            pl.BlockSpec((1, latent), const_map),     # b_log_var (natural width, for z)
        ],
        out_specs=pl.BlockSpec((TB, OUTW), batch_map),
        compiler_params=pltpu.CompilerParams(
            dimension_semantics=("parallel",),        # v7x: shard batch over 2 TCs
        ),
    )(x, eps, packed["w_in"], packed["b_in"], packed["w_h"], packed["b_h"],
      packed["w_heads"], packed["b_heads"], packed["w_lvz"], packed["b_lvz"])

    # Unpack the lane-dense slab [z | mean | var | log_var] (and drop batch padding).
    z = slab[:B, 0 * latent:1 * latent]
    mean = slab[:B, 1 * latent:2 * latent]
    var = slab[:B, 2 * latent:3 * latent]
    log_var = slab[:B, 3 * latent:4 * latent]
    return z, mean, var, log_var


# --------------------------------------------------------------------------
# Test harness
# --------------------------------------------------------------------------
def init_params(input_dim, hidden_dim, latent_dim, key):
    """Deterministic synthetic Linear parameters (PyTorch-style fan_in scaling)."""
    ks = jax.random.split(key, 8)

    def lin(kw, kb, fan_in, fan_out):
        bound = 1.0 / jnp.sqrt(float(fan_in))
        w = jax.random.uniform(kw, (fan_in, fan_out), jnp.float32, -bound, bound)
        b = jax.random.uniform(kb, (1, fan_out), jnp.float32, -bound, bound)
        return w, b

    w_in, b_in = lin(ks[0], ks[1], input_dim, hidden_dim)
    w_h, b_h = lin(ks[2], ks[3], hidden_dim, hidden_dim)
    w_mu, b_mu = lin(ks[4], ks[5], hidden_dim, latent_dim)
    w_lv, b_lv = lin(ks[6], ks[7], hidden_dim, latent_dim)
    return dict(w_in=w_in, b_in=b_in, w_h=w_h, b_h=b_h,
                w_mu=w_mu, b_mu=b_mu, w_lv=w_lv, b_lv=b_lv)


def _reference_forward(x, eps, p):
    """Plain-JAX f32 reference matching the PyTorch encoder semantics."""
    h0 = jnp.maximum(x @ p["w_in"] + p["b_in"], 0.0)
    h = jnp.tanh(h0 @ p["w_h"] + p["b_h"])
    mean = h @ p["w_mu"] + p["b_mu"]
    log_var = h @ p["w_lv"] + p["b_lv"]
    var = jnp.exp(0.5 * log_var)          # std-dev, kept as `var` per the module
    z = mean + eps * var
    return z, mean, var, log_var


if __name__ == "__main__":
    # Small shapes consistent with the module: x is (batch, input_dim).
    batch = 8
    input_dim = 16
    hidden_dim = 32
    latent_dim = 8

    key = jax.random.PRNGKey(0)
    k_x, k_eps, k_params = jax.random.split(key, 3)

    x = jax.random.normal(k_x, (batch, input_dim), dtype=jnp.float32)
    # TODO(synk): torch.randn_like lives inside the PyTorch forward; here the
    # Gaussian noise is drawn outside the kernel and passed in as `eps`.
    eps = jax.random.normal(k_eps, (batch, latent_dim), dtype=jnp.float32)
    params = init_params(input_dim, hidden_dim, latent_dim, k_params)

    packed = prepare_params(params)          # one-time packing, outside jit
    fwd = jax.jit(variational_discriminant_forward)
    outs = jax.block_until_ready(fwd(x, eps, packed))

    refs = _reference_forward(x, eps, params)
    names = ("z", "mean", "var", "log_var")
    for name, got, want in zip(names, outs, refs):
        assert got.shape == want.shape, (name, got.shape, want.shape)
        err = float(jnp.max(jnp.abs(got - want)))
        assert jnp.allclose(got, want, atol=3e-2, rtol=3e-2), f"mismatch in {name}: {err}"

    print("KERNEL_OK")
</pallas_src>

<mosaic_0001>
module attributes {stable_mosaic.version = 11 : i64} {
  func.func @_vd_kernel(%arg0: i32, %arg1: memref<8x16xf32, #tpu.memory_space<vmem>>, %arg2: memref<8x8xf32, #tpu.memory_space<vmem>>, %arg3: memref<16x128xf32, #tpu.memory_space<vmem>>, %arg4: memref<1x128xf32, #tpu.memory_space<vmem>>, %arg5: memref<128x128xf32, #tpu.memory_space<vmem>>, %arg6: memref<1x128xf32, #tpu.memory_space<vmem>>, %arg7: memref<128x128xf32, #tpu.memory_space<vmem>>, %arg8: memref<1x128xf32, #tpu.memory_space<vmem>>, %arg9: memref<128x8xf32, #tpu.memory_space<vmem>>, %arg10: memref<1x8xf32, #tpu.memory_space<vmem>>, %arg11: memref<8x128xf32, #tpu.memory_space<vmem>>) attributes {dimension_semantics = [#tpu.dimension_semantics<parallel>], iteration_bounds = array<i64: 1>, scalar_prefetch = 0 : i64, scratch_operands = 0 : i64, tpu.core_type = #tpu.core_type<tc>, window_params = [{transform_indices = @transform_0, window_bounds = array<i64: 8, 16>}, {transform_indices = @transform_1, window_bounds = array<i64: 8, 8>}, {pipeline_mode = #tpu.pipeline_mode<synchronous>, transform_indices = @transform_2, window_bounds = array<i64: 16, 128>}, {pipeline_mode = #tpu.pipeline_mode<synchronous>, transform_indices = @transform_3, window_bounds = array<i64: 1, 128>}, {pipeline_mode = #tpu.pipeline_mode<synchronous>, transform_indices = @transform_4, window_bounds = array<i64: 128, 128>}, {pipeline_mode = #tpu.pipeline_mode<synchronous>, transform_indices = @transform_5, window_bounds = array<i64: 1, 128>}, {pipeline_mode = #tpu.pipeline_mode<synchronous>, transform_indices = @transform_6, window_bounds = array<i64: 128, 128>}, {pipeline_mode = #tpu.pipeline_mode<synchronous>, transform_indices = @transform_7, window_bounds = array<i64: 1, 128>}, {pipeline_mode = #tpu.pipeline_mode<synchronous>, transform_indices = @transform_8, window_bounds = array<i64: 128, 8>}, {pipeline_mode = #tpu.pipeline_mode<synchronous>, transform_indices = @transform_9, window_bounds = array<i64: 1, 8>}, {transform_indices = @transform_10, window_bounds = array<i64: 8, 128>}]} {
    %c0 = arith.constant 0 : index
    %c0_0 = arith.constant 0 : index
    %0 = vector.load %arg1[%c0, %c0_0] : memref<8x16xf32, #tpu.memory_space<vmem>>, vector<8x16xf32>
    %c0_1 = arith.constant 0 : index
    %c0_2 = arith.constant 0 : index
    %1 = vector.load %arg3[%c0_1, %c0_2] : memref<16x128xf32, #tpu.memory_space<vmem>>, vector<16x128xf32>
    %cst = arith.constant dense<0.000000e+00> : vector<8x128xf32>
    %2 = tpu.matmul %0, %1, %cst {dimension_numbers = #tpu.dot_dimension_numbers<[1], [0], [0], [1], [0, 0, 1, 1], [], []>} : vector<8x16xf32>, vector<16x128xf32>, vector<8x128xf32> -> vector<8x128xf32>
    %c0_3 = arith.constant 0 : index
    %c0_4 = arith.constant 0 : index
    %3 = vector.load %arg4[%c0_3, %c0_4] : memref<1x128xf32, #tpu.memory_space<vmem>>, vector<1x128xf32>
    %4 = vector.broadcast %3 : vector<1x128xf32> to vector<8x128xf32>
    %5 = arith.addf %2, %4 : vector<8x128xf32>
    %cst_5 = arith.constant 0.000000e+00 : f32
    %6 = vector.broadcast %cst_5 : f32 to vector<8x128xf32>
    %7 = arith.maximumf %5, %6 : vector<8x128xf32>
    %c0_6 = arith.constant 0 : index
    %c0_7 = arith.constant 0 : index
    %8 = vector.load %arg5[%c0_6, %c0_7] : memref<128x128xf32, #tpu.memory_space<vmem>>, vector<128x128xf32>
    %cst_8 = arith.constant dense<0.000000e+00> : vector<8x128xf32>
    %9 = tpu.matmul %7, %8, %cst_8 {dimension_numbers = #tpu.dot_dimension_numbers<[1], [0], [0], [1], [0, 0, 1, 1], [], []>} : vector<8x128xf32>, vector<128x128xf32>, vector<8x128xf32> -> vector<8x128xf32>
    %c0_9 = arith.constant 0 : index
    %c0_10 = arith.constant 0 : index
    %10 = vector.load %arg6[%c0_9, %c0_10] : memref<1x128xf32, #tpu.memory_space<vmem>>, vector<1x128xf32>
    %11 = vector.broadcast %10 : vector<1x128xf32> to vector<8x128xf32>
    %12 = arith.addf %9, %11 : vector<8x128xf32>
    %13 = math.tanh %12 : vector<8x128xf32>
    %c0_11 = arith.constant 0 : index
    %c0_12 = arith.constant 0 : index
    %14 = vector.load %arg7[%c0_11, %c0_12] : memref<128x128xf32, #tpu.memory_space<vmem>>, vector<128x128xf32>
    %cst_13 = arith.constant dense<0.000000e+00> : vector<8x128xf32>
    %15 = tpu.matmul %13, %14, %cst_13 {dimension_numbers = #tpu.dot_dimension_numbers<[1], [0], [0], [1], [0, 0, 1, 1], [], []>} : vector<8x128xf32>, vector<128x128xf32>, vector<8x128xf32> -> vector<8x128xf32>
    %c0_14 = arith.constant 0 : index
    %c0_15 = arith.constant 0 : index
    %16 = vector.load %arg8[%c0_14, %c0_15] : memref<1x128xf32, #tpu.memory_space<vmem>>, vector<1x128xf32>
    %17 = vector.broadcast %16 : vector<1x128xf32> to vector<8x128xf32>
    %18 = arith.addf %15, %17 : vector<8x128xf32>
    %19 = tpu.iota {dimensions = array<i32: 1>} : vector<8x128xi32>
    %c16_i32 = arith.constant 16 : i32
    %20 = vector.broadcast %c16_i32 : i32 to vector<8x128xi32>
    %21 = arith.cmpi sge, %19, %20 : vector<8x128xi32>
    %c24_i32 = arith.constant 24 : i32
    %22 = vector.broadcast %c24_i32 : i32 to vector<8x128xi32>
    %23 = arith.cmpi slt, %19, %22 : vector<8x128xi32>
    %24 = arith.andi %21, %23 : vector<8x128xi1>
    %cst_16 = arith.constant 5.000000e-01 : f32
    %25 = vector.broadcast %cst_16 : f32 to vector<8x128xf32>
    %26 = arith.mulf %25, %18 : vector<8x128xf32>
    %27 = math.exp %26 : vector<8x128xf32>
    %28 = arith.select %24, %27, %18 : vector<8x128xi1>, vector<8x128xf32>
    %c0_17 = arith.constant 0 : index
    %c0_18 = arith.constant 0 : index
    %29 = vector.load %arg9[%c0_17, %c0_18] : memref<128x8xf32, #tpu.memory_space<vmem>>, vector<128x8xf32>
    %cst_19 = arith.constant dense<0.000000e+00> : vector<8x8xf32>
    %30 = tpu.matmul %13, %29, %cst_19 {dimension_numbers = #tpu.dot_dimension_numbers<[1], [0], [0], [1], [0, 0, 1, 1], [], []>} : vector<8x128xf32>, vector<128x8xf32>, vector<8x8xf32> -> vector<8x8xf32>
    %c0_20 = arith.constant 0 : index
    %c0_21 = arith.constant 0 : index
    %31 = vector.load %arg10[%c0_20, %c0_21] : memref<1x8xf32, #tpu.memory_space<vmem>>, vector<1x8xf32>
    %32 = vector.broadcast %31 : vector<1x8xf32> to vector<8x8xf32>
    %33 = arith.addf %30, %32 : vector<8x8xf32>
    %34 = vector.extract_strided_slice %18 {offsets = [0, 0], sizes = [8, 8], strides = [1, 1]} : vector<8x128xf32> to vector<8x8xf32>
    %c0_22 = arith.constant 0 : index
    %c0_23 = arith.constant 0 : index
    %35 = vector.load %arg2[%c0_22, %c0_23] : memref<8x8xf32, #tpu.memory_space<vmem>>, vector<8x8xf32>
    %cst_24 = arith.constant 5.000000e-01 : f32
    %36 = vector.broadcast %cst_24 : f32 to vector<8x8xf32>
    %37 = arith.mulf %36, %33 : vector<8x8xf32>
    %38 = math.exp %37 : vector<8x8xf32>
    %39 = arith.mulf %35, %38 : vector<8x8xf32>
    %40 = arith.addf %34, %39 : vector<8x8xf32>
    %c0_25 = arith.constant 0 : index
    %c0_26 = arith.constant 0 : index
    %41 = vector.load %arg11[%c0_25, %c0_26] : memref<8x128xf32, #tpu.memory_space<vmem>>, vector<8x128xf32>
    tpu.vector_store %arg11[%c0_25, %c0_26], %28 {strides = array<i32>} : memref<8x128xf32, #tpu.memory_space<vmem>>, vector<8x128xf32>,
    %c0_27 = arith.constant 0 : index
    %c0_28 = arith.constant 0 : index
    %42 = vector.load %arg11[%c0_27, %c0_28] : memref<8x128xf32, #tpu.memory_space<vmem>>, vector<8x8xf32>
    tpu.vector_store %arg11[%c0_27, %c0_28], %40 {strides = array<i32>} : memref<8x128xf32, #tpu.memory_space<vmem>>, vector<8x8xf32>,
    return
  }
  func.func @transform_0(%arg0: i32) -> (i32, i32) {
    %c0_i32 = arith.constant 0 : i32
    %c0_i32_0 = arith.constant 0 : i32
    return %arg0, %c0_i32 : i32, i32
  }
  func.func @transform_1(%arg0: i32) -> (i32, i32) {
    %c0_i32 = arith.constant 0 : i32
    %c0_i32_0 = arith.constant 0 : i32
    return %arg0, %c0_i32 : i32, i32
  }
  func.func @transform_2(%arg0: i32) -> (i32, i32) {
    %c0_i32 = arith.constant 0 : i32
    %c0_i32_0 = arith.constant 0 : i32
    %c0_i32_1 = arith.constant 0 : i32
    return %c0_i32, %c0_i32_0 : i32, i32
  }
  func.func @transform_3(%arg0: i32) -> (i32, i32) {
    %c0_i32 = arith.constant 0 : i32
    %c0_i32_0 = arith.constant 0 : i32
    %c0_i32_1 = arith.constant 0 : i32
    return %c0_i32, %c0_i32_0 : i32, i32
  }
  func.func @transform_4(%arg0: i32) -> (i32, i32) {
    %c0_i32 = arith.constant 0 : i32
    %c0_i32_0 = arith.constant 0 : i32
    %c0_i32_1 = arith.constant 0 : i32
    return %c0_i32, %c0_i32_0 : i32, i32
  }
  func.func @transform_5(%arg0: i32) -> (i32, i32) {
    %c0_i32 = arith.constant 0 : i32
    %c0_i32_0 = arith.constant 0 : i32
    %c0_i32_1 = arith.constant 0 : i32
    return %c0_i32, %c0_i32_0 : i32, i32
  }
  func.func @transform_6(%arg0: i32) -> (i32, i32) {
    %c0_i32 = arith.constant 0 : i32
    %c0_i32_0 = arith.constant 0 : i32
    %c0_i32_1 = arith.constant 0 : i32
    return %c0_i32, %c0_i32_0 : i32, i32
  }
  func.func @transform_7(%arg0: i32) -> (i32, i32) {
    %c0_i32 = arith.constant 0 : i32
    %c0_i32_0 = arith.constant 0 : i32
    %c0_i32_1 = arith.constant 0 : i32
    return %c0_i32, %c0_i32_0 : i32, i32
  }
  func.func @transform_8(%arg0: i32) -> (i32, i32) {
    %c0_i32 = arith.constant 0 : i32
    %c0_i32_0 = arith.constant 0 : i32
    %c0_i32_1 = arith.constant 0 : i32
    return %c0_i32, %c0_i32_0 : i32, i32
  }
  func.func @transform_9(%arg0: i32) -> (i32, i32) {
    %c0_i32 = arith.constant 0 : i32
    %c0_i32_0 = arith.constant 0 : i32
    %c0_i32_1 = arith.constant 0 : i32
    return %c0_i32, %c0_i32_0 : i32, i32
  }
  func.func @transform_10(%arg0: i32) -> (i32, i32) {
    %c0_i32 = arith.constant 0 : i32
    %c0_i32_0 = arith.constant 0 : i32
    return %arg0, %c0_i32 : i32, i32
  }
}

</mosaic_0001>

<llo_original>
// kernel: variational_discriminant_forward.1
$region0: #{variational_discriminant_forward.1}
  #allocation0 [shape = 'u32[]', space=smem, size = 0x4, offset = 0x4, fixed_abs, tag = 'smem constant byte address 0x4 - core index']
  #allocation1 [shape = 'u32[72,128]{1,0:T(1,128)}', space=vmem, size = 0x9000, scoped, tag = 'internal scratch']
  %s0 = inlined_call_operand.vmem [shape: f32[8,16], index: 0, kind: input, shape index: {}]
  %s1 = inlined_call_operand.hbm [shape: f32[8,8], index: 1, kind: input, shape index: {}]
  %s2 = inlined_call_operand.hbm [shape: f32[16,128], index: 2, kind: input, shape index: {}]
  %s3 = inlined_call_operand.hbm [shape: f32[1,128], index: 3, kind: input, shape index: {}]
  %s4 = inlined_call_operand.vmem [shape: f32[128,128], index: 4, kind: input, shape index: {}]
  %s5 = inlined_call_operand.hbm [shape: f32[1,128], index: 5, kind: input, shape index: {}]
  %s6 = inlined_call_operand.hbm [shape: f32[128,128], index: 6, kind: input, shape index: {}]
  %s7 = inlined_call_operand.hbm [shape: f32[1,128], index: 7, kind: input, shape index: {}]
  %s8 = inlined_call_operand.vmem [shape: f32[128,8], index: 8, kind: input, shape index: {}]
  %s9 = inlined_call_operand.hbm [shape: f32[1,8], index: 9, kind: input, shape index: {}]
  %s10 = inlined_call_operand.vmem [shape: f32[8,128], index: 10, kind: output, shape index: {}]
  %s11 = sld [smem:[#allocation0]]
  $region78: #{variational_discriminant_forward.1} parent=0
    _
  %s13 = ssub.s32 1, %s11
  %s14 = scalar_select 0, %s13, %s11
  $region1: #{variational_discriminant_forward.1} parent=0
    #allocation2 [shape = 'u8[4096]{0}', space=vmem, size = 0x1000, scoped, tag = 'input window, operand 1, single buffered']
    #allocation3 [shape = 's32[1]{0}', space=sflag, size = 0x4, scoped, tag = 'scoped memory for variational_discriminant_forward.1']
    #allocation4 [shape = 'u8[8192]{0}', space=vmem, size = 0x2000, scoped, tag = 'input window, operand 2, single buffered']
    #allocation5 [shape = 's32[1]{0}', space=sflag, size = 0x4, scoped, tag = 'scoped memory for variational_discriminant_forward.1']
    #allocation6 [shape = 'u8[512]{0}', space=vmem, size = 0x400, scoped, tag = 'input window, operand 3, single buffered']
    #allocation7 [shape = 'u8[512]{0}', space=vmem, size = 0x400, scoped, tag = 'input window, operand 5, single buffered']
    #allocation8 [shape = 's32[1]{0}', space=sflag, size = 0x4, scoped, tag = 'scoped memory for variational_discriminant_forward.1']
    #allocation9 [shape = 'u8[65536]{0}', space=vmem, size = 0x10000, scoped, tag = 'input window, operand 6, single buffered']
    #allocation10 [shape = 'u8[512]{0}', space=vmem, size = 0x400, scoped, tag = 'input window, operand 7, single buffered']
    #allocation11 [shape = 's32[1]{0}', space=sflag, size = 0x4, scoped, tag = 'scoped memory for variational_discriminant_forward.1']
    #allocation12 [shape = 'u8[512]{0}', space=vmem, size = 0x400, scoped, tag = 'input window, operand 9, single buffered']
    %15 = vsyncpa [#allocation3], 0
    %16 = vsyncpa [#allocation5], 0
    %17 = vsyncpa [#allocation8], 0
    %18 = vsyncpa [#allocation11], 0
    // Predicated region
    $region2: #{variational_discriminant_forward.1} parent=1 // pred_check
      _
    $region3: #{variational_discriminant_forward.1} parent=1 // pred_check_branch
      %20 = sbr.rel (0) target = $region5
    $region4: #{variational_discriminant_forward.1} parent=1 // pred_region
      _
    $region5: #{variational_discriminant_forward.1} parent=1 // pred_fallthru
      _
    // Predicated region
    $region6: #{variational_discriminant_forward.1} parent=1 // pred_check
      _
    $region7: #{variational_discriminant_forward.1} parent=1 // pred_check_branch
      %22 = sbr.rel (0) target = $region9
    $region8: #{variational_discriminant_forward.1} parent=1 // pred_region
      %24 = vsyncadd [#allocation3], 0
      %s26 = sshll.u32 %s1, 4
      %s27 = int_to_ptr.hbm [resolvable:$true] %s26
      %s28 = sshll.u32 [#allocation2], 4
      %s29 = int_to_ptr.vmem [resolvable:$true] %s28
      %31 = dma.hbm_to_vmem [thread:$0]  %s27, 128, %s29, [#allocation3]
    $region9: #{variational_discriminant_forward.1} parent=1 // pred_fallthru
      _
    // Predicated region
    $region10: #{variational_discriminant_forward.1} parent=1 // pred_check
      _
    $region11: #{variational_discriminant_forward.1} parent=1 // pred_check_branch
      %33 = sbr.rel (0) target = $region13
    $region12: #{variational_discriminant_forward.1} parent=1 // pred_region
      %35 = vsyncadd [#allocation5], 0
      %s36 = sshll.u32 %s2, 4
      %s37 = int_to_ptr.hbm [resolvable:$true] %s36
      %s38 = sshll.u32 [#allocation4], 4
      %s39 = int_to_ptr.vmem [resolvable:$true] %s38
      %44 = dma.hbm_to_vmem [thread:$0]  %s37, 256, %s39, [#allocation5], 128, 128, 8
    $region13: #{variational_discriminant_forward.1} parent=1 // pred_fallthru
      _
    // Predicated region
    $region14: #{variational_discriminant_forward.1} parent=1 // pred_check
      _
    $region15: #{variational_discriminant_forward.1} parent=1 // pred_check_branch
      %46 = sbr.rel (0) target = $region17
    $region16: #{variational_discriminant_forward.1} parent=1 // pred_region
      %48 = vsyncadd [#allocation5], 0
      %s50 = sshll.u32 %s3, 4
      %s51 = int_to_ptr.hbm [resolvable:$true] %s50
      %s52 = sshll.u32 [#allocation6], 4
      %s53 = int_to_ptr.vmem [resolvable:$true] %s52
      %55 = dma.hbm_to_vmem [thread:$0]  %s51, 16, %s53, [#allocation5]
    $region17: #{variational_discriminant_forward.1} parent=1 // pred_fallthru
      _
    // Predicated region
    $region18: #{variational_discriminant_forward.1} parent=1 // pred_check
      _
    $region19: #{variational_discriminant_forward.1} parent=1 // pred_check_branch
      %57 = sbr.rel (0) target = $region21
    $region20: #{variational_discriminant_forward.1} parent=1 // pred_region
      _
    $region21: #{variational_discriminant_forward.1} parent=1 // pred_fallthru
      _
    // Predicated region
    $region22: #{variational_discriminant_forward.1} parent=1 // pred_check
      _
    $region23: #{variational_discriminant_forward.1} parent=1 // pred_check_branch
      %59 = sbr.rel (0) target = $region25
    $region24: #{variational_discriminant_forward.1} parent=1 // pred_region
      %61 = vsyncadd [#allocation8], 0
      %s63 = sshll.u32 %s5, 4
      %s64 = int_to_ptr.hbm [resolvable:$true] %s63
      %s65 = sshll.u32 [#allocation7], 4
      %s66 = int_to_ptr.vmem [resolvable:$true] %s65
      %68 = dma.hbm_to_vmem [thread:$0]  %s64, 16, %s66, [#allocation8]
    $region25: #{variational_discriminant_forward.1} parent=1 // pred_fallthru
      _
    // Predicated region
    $region26: #{variational_discriminant_forward.1} parent=1 // pred_check
      _
    $region27: #{variational_discriminant_forward.1} parent=1 // pred_check_branch
      %70 = sbr.rel (0) target = $region29
    $region28: #{variational_discriminant_forward.1} parent=1 // pred_region
      %72 = vsyncadd [#allocation8], 0
      %s73 = sshll.u32 %s6, 4
      %s74 = int_to_ptr.hbm [resolvable:$true] %s73
      %s75 = sshll.u32 [#allocation9], 4
      %s76 = int_to_ptr.vmem [resolvable:$true] %s75
      %81 = dma.hbm_to_vmem [thread:$0]  %s74, 2048, %s76, [#allocation8], 128, 128, 8
    $region29: #{variational_discriminant_forward.1} parent=1 // pred_fallthru
      _
    // Predicated region
    $region30: #{variational_discriminant_forward.1} parent=1 // pred_check
      _
    $region31: #{variational_discriminant_forward.1} parent=1 // pred_check_branch
      %83 = sbr.rel (0) target = $region33
    $region32: #{variational_discriminant_forward.1} parent=1 // pred_region
      %85 = vsyncadd [#allocation11], 0
      %s87 = sshll.u32 %s7, 4
      %s88 = int_to_ptr.hbm [resolvable:$true] %s87
      %s89 = sshll.u32 [#allocation10], 4
      %s90 = int_to_ptr.vmem [resolvable:$true] %s89
      %92 = dma.hbm_to_vmem [thread:$0]  %s88, 16, %s90, [#allocation11]
    $region33: #{variational_discriminant_forward.1} parent=1 // pred_fallthru
      _
    // Predicated region
    $region34: #{variational_discriminant_forward.1} parent=1 // pred_check
      _
    $region35: #{variational_discriminant_forward.1} parent=1 // pred_check_branch
      %94 = sbr.rel (0) target = $region37
    $region36: #{variational_discriminant_forward.1} parent=1 // pred_region
      _
    $region37: #{variational_discriminant_forward.1} parent=1 // pred_fallthru
      _
    // Predicated region
    $region38: #{variational_discriminant_forward.1} parent=1 // pred_check
      _
    $region39: #{variational_discriminant_forward.1} parent=1 // pred_check_branch
      %96 = sbr.rel (0) target = $region41
    $region40: #{variational_discriminant_forward.1} parent=1 // pred_region
      %98 = vsyncadd [#allocation11], 0
      %s100 = sshll.u32 %s9, 4
      %s101 = int_to_ptr.hbm [resolvable:$true] %s100
      %s102 = sshll.u32 [#allocation12], 4
      %s103 = int_to_ptr.vmem [resolvable:$true] %s102
      %105 = dma.hbm_to_vmem [thread:$0]  %s101, 16, %s103, [#allocation11]
    $region41: #{variational_discriminant_forward.1} parent=1 // pred_fallthru
      _
    // Predicated region
    $region42: #{variational_discriminant_forward.1} parent=1 // pred_check
      _
    $region43: #{variational_discriminant_forward.1} parent=1 // pred_check_branch
      %107 = sbr.rel (0) target = $region45
    $region44: #{variational_discriminant_forward.1} parent=1 // pred_region
      %109 = dma.done [#allocation3], 128
    $region45: #{variational_discriminant_forward.1} parent=1 // pred_fallthru
      _
    // Predicated region
    $region46: #{variational_discriminant_forward.1} parent=1 // pred_check
      _
    $region47: #{variational_discriminant_forward.1} parent=1 // pred_check_branch
      %111 = sbr.rel (0) target = $region49
    $region48: #{variational_discriminant_forward.1} parent=1 // pred_region
      %113 = dma.done [#allocation5], 256
    $region49: #{variational_discriminant_forward.1} parent=1 // pred_fallthru
      _
    // Predicated region
    $region50: #{variational_discriminant_forward.1} parent=1 // pred_check
      _
    $region51: #{variational_discriminant_forward.1} parent=1 // pred_check_branch
      %115 = sbr.rel (0) target = $region53
    $region52: #{variational_discriminant_forward.1} parent=1 // pred_region
      %117 = dma.done [#allocation5], 16
    $region53: #{variational_discriminant_forward.1} parent=1 // pred_fallthru
      _
    // Predicated region
    $region54: #{variational_discriminant_forward.1} parent=1 // pred_check
      _
    $region55: #{variational_discriminant_forward.1} parent=1 // pred_check_branch
      %119 = sbr.rel (0) target = $region57
    $region56: #{variational_discriminant_forward.1} parent=1 // pred_region
      %121 = dma.done [#allocation8], 16
    $region57: #{variational_discriminant_forward.1} parent=1 // pred_fallthru
      _
    // Predicated region
    $region58: #{variational_discriminant_forward.1} parent=1 // pred_check
      _
    $region59: #{variational_discriminant_forward.1} parent=1 // pred_check_branch
      %123 = sbr.rel (0) target = $region61
    $region60: #{variational_discriminant_forward.1} parent=1 // pred_region
      %125 = dma.done [#allocation8], 2048
    $region61: #{variational_discriminant_forward.1} parent=1 // pred_fallthru
      _
    // Predicated region
    $region62: #{variational_discriminant_forward.1} parent=1 // pred_check
      _
    $region63: #{variational_discriminant_forward.1} parent=1 // pred_check_branch
      %127 = sbr.rel (0) target = $region65
    $region64: #{variational_discriminant_forward.1} parent=1 // pred_region
      %129 = dma.done [#allocation11], 16
    $region65: #{variational_discriminant_forward.1} parent=1 // pred_fallthru
      _
    // Predicated region
    $region66: #{variational_discriminant_forward.1} parent=1 // pred_check
      _
    $region67: #{variational_discriminant_forward.1} parent=1 // pred_check_branch
      %131 = sbr.rel (0) target = $region69
    $region68: #{variational_discriminant_forward.1} parent=1 // pred_region
      %133 = dma.done [#allocation11], 16
    $region69: #{variational_discriminant_forward.1} parent=1 // pred_fallthru
      _
    %v134 = vld [vmem:[%s0] sm:$0xff]
    %v135 = vld [vmem:[#allocation4] sm:$0xff]
    %v136 = vld [vmem:[#allocation4 + $0x8] sm:$0xff]
    %v137 = vld [vmem:[#allocation6] sm:$0x1]
    %v139 = vperm.slane %v137, 0
    %vm141 = vcmask 130048
    %v143 = vsel %vm141, %v134, 0
    %145 = vmatpush.msra.mxu0 0.0
    %146 = vmatpush.msra.mxu0 0.0
    %147 = vmatpush.msra.mxu0 0.0
    %148 = vmatpush.msra.mxu0 0.0
    %149 = vmatpush.msra.mxu0 0.0
    %150 = vmatpush.msra.mxu0 0.0
    %151 = vmatpush.msra.mxu0 0.0
    %152 = vmatpush.msra.mxu0 0.0
    %153 = vmatpush.msra.mxu0 0.0
    %154 = vmatpush.msra.mxu0 0.0
    %155 = vmatpush.msra.mxu0 0.0
    %156 = vmatpush.msra.mxu0 0.0
    %157 = vmatpush.msra.mxu0 0.0
    %158 = vmatpush.msra.mxu0 0.0
    %159 = vmatpush.msra.mxu0 %v136
    %160 = vmatpush.msra.mxu0 %v135
    %161 = vmatmul.f32.gmra.mxu0 %v143
    %v162 = vpop.f32.mrf.mxu0
    %v163 = vadd.f32 %v139, %v162
    %164 = vdwg.mxu0
    %v165 = vmax.f32 %v163, 0.0
    %v166 = vld [vmem:[%s4] sm:$0xff]
    %v167 = vld [vmem:[%s4 + $0x8] sm:$0xff]
    %v168 = vld [vmem:[%s4 + $0x10] sm:$0xff]
    %v169 = vld [vmem:[%s4 + $0x18] sm:$0xff]
    %v170 = vld [vmem:[%s4 + $0x20] sm:$0xff]
    %v171 = vld [vmem:[%s4 + $0x28] sm:$0xff]
    %v172 = vld [vmem:[%s4 + $0x30] sm:$0xff]
    %v173 = vld [vmem:[%s4 + $0x38] sm:$0xff]
    %v174 = vld [vmem:[%s4 + $0x40] sm:$0xff]
    %v175 = vld [vmem:[%s4 + $0x48] sm:$0xff]
    %v176 = vld [vmem:[%s4 + $0x50] sm:$0xff]
    %v177 = vld [vmem:[%s4 + $0x58] sm:$0xff]
    %v178 = vld [vmem:[%s4 + $0x60] sm:$0xff]
    %v179 = vld [vmem:[%s4 + $0x68] sm:$0xff]
    %v180 = vld [vmem:[%s4 + $0x70] sm:$0xff]
    %v181 = vld [vmem:[%s4 + $0x78] sm:$0xff]
    %v182 = vld [vmem:[#allocation7] sm:$0x1]
    %v184 = vperm.slane %v182, 0
    %186 = vmatpush.msra.mxu0 %v181
    %187 = vmatpush.msra.mxu0 %v180
    %188 = vmatpush.msra.mxu0 %v179
    %189 = vmatpush.msra.mxu0 %v178
    %190 = vmatpush.msra.mxu0 %v177
    %191 = vmatpush.msra.mxu0 %v176
    %192 = vmatpush.msra.mxu0 %v175
    %193 = vmatpush.msra.mxu0 %v174
    %194 = vmatpush.msra.mxu0 %v173
    %195 = vmatpush.msra.mxu0 %v172
    %196 = vmatpush.msra.mxu0 %v171
    %197 = vmatpush.msra.mxu0 %v170
    %198 = vmatpush.msra.mxu0 %v169
    %199 = vmatpush.msra.mxu0 %v168
    %200 = vmatpush.msra.mxu0 %v167
    %201 = vmatpush.msra.mxu0 %v166
    %202 = vmatmul.f32.gmra.mxu0 %v165
    %v203 = vpop.f32.mrf.mxu0
    %v204 = vadd.f32 %v184, %v203
    %205 = vdwg.mxu0
    %v206 = vtanh.pop %v204
    %v207 = vld [vmem:[#allocation9] sm:$0xff]
    %v208 = vld [vmem:[#allocation9 + $0x8] sm:$0xff]
    %v209 = vld [vmem:[#allocation9 + $0x10] sm:$0xff]
    %v210 = vld [vmem:[#allocation9 + $0x18] sm:$0xff]
    %v211 = vld [vmem:[#allocation9 + $0x20] sm:$0xff]
    %v212 = vld [vmem:[#allocation9 + $0x28] sm:$0xff]
    %v213 = vld [vmem:[#allocation9 + $0x30] sm:$0xff]
    %v214 = vld [vmem:[#allocation9 + $0x38] sm:$0xff]
    %v215 = vld [vmem:[#allocation9 + $0x40] sm:$0xff]
    %v216 = vld [vmem:[#allocation9 + $0x48] sm:$0xff]
    %v217 = vld [vmem:[#allocation9 + $0x50] sm:$0xff]
    %v218 = vld [vmem:[#allocation9 + $0x58] sm:$0xff]
    %v219 = vld [vmem:[#allocation9 + $0x60] sm:$0xff]
    %v220 = vld [vmem:[#allocation9 + $0x68] sm:$0xff]
    %v221 = vld [vmem:[#allocation9 + $0x70] sm:$0xff]
    %v222 = vld [vmem:[#allocation9 + $0x78] sm:$0xff]
    %v223 = vld [vmem:[#allocation10] sm:$0x1]
    %v225 = vperm.slane %v223, 0
    %227 = vmatpush.msra.mxu0 %v222
    %228 = vmatpush.msra.mxu0 %v221
    %229 = vmatpush.msra.mxu0 %v220
    %230 = vmatpush.msra.mxu0 %v219
    %231 = vmatpush.msra.mxu0 %v218
    %232 = vmatpush.msra.mxu0 %v217
    %233 = vmatpush.msra.mxu0 %v216
    %234 = vmatpush.msra.mxu0 %v215
    %235 = vmatpush.msra.mxu0 %v214
    %236 = vmatpush.msra.mxu0 %v213
    %237 = vmatpush.msra.mxu0 %v212
    %238 = vmatpush.msra.mxu0 %v211
    %239 = vmatpush.msra.mxu0 %v210
    %240 = vmatpush.msra.mxu0 %v209
    %241 = vmatpush.msra.mxu0 %v208
    %242 = vmatpush.msra.mxu0 %v207
    %243 = vmatmul.f32.gmra.mxu0 %v206
    %v244 = vpop.f32.mrf.mxu0
    %v245 = vadd.f32 %v225, %v244
    %246 = vdwg.mxu0
    %v247 = vlaneseq
    %v248 = vand.u32 %v247, 127
    %vm249 = vcmp.ge.s32.totalorder %v248, 16
    %vm250 = vcmp.lt.s32.totalorder %v248, 24
    %vm251 = vmand %vm249, %vm250
    %v252 = vmul.f32 %v245, 0.5
    %v253 = vmul.f32 %v252, 1.442695
    %v254 = vpow.pop %v253
    %v255 = vsel %vm251, %v254, %v245
    %v256 = vld [vmem:[%s8] sm:$0xff]
    %v257 = vld [vmem:[%s8 + $0x8] sm:$0xff]
    %v258 = vld [vmem:[%s8 + $0x10] sm:$0xff]
    %v259 = vld [vmem:[%s8 + $0x18] sm:$0xff]
    %v260 = vld [vmem:[%s8 + $0x20] sm:$0xff]
    %v261 = vld [vmem:[%s8 + $0x28] sm:$0xff]
    %v262 = vld [vmem:[%s8 + $0x30] sm:$0xff]
    %v263 = vld [vmem:[%s8 + $0x38] sm:$0xff]
    %v264 = vld [vmem:[%s8 + $0x40] sm:$0xff]
    %v265 = vld [vmem:[%s8 + $0x48] sm:$0xff]
    %v266 = vld [vmem:[%s8 + $0x50] sm:$0xff]
    %v267 = vld [vmem:[%s8 + $0x58] sm:$0xff]
    %v268 = vld [vmem:[%s8 + $0x60] sm:$0xff]
    %v269 = vld [vmem:[%s8 + $0x68] sm:$0xff]
    %v270 = vld [vmem:[%s8 + $0x70] sm:$0xff]
    %v271 = vld [vmem:[%s8 + $0x78] sm:$0xff]
    %v272 = vld [vmem:[#allocation12] sm:$0x1]
    %v274 = vperm.slane %v272, 0
    %276 = vmatpush.msra.mxu0 %v271
    %277 = vmatpush.msra.mxu0 %v270
    %278 = vmatpush.msra.mxu0 %v269
    %279 = vmatpush.msra.mxu0 %v268
    %280 = vmatpush.msra.mxu0 %v267
    %281 = vmatpush.msra.mxu0 %v266
    %282 = vmatpush.msra.mxu0 %v265
    %283 = vmatpush.msra.mxu0 %v264
    %284 = vmatpush.msra.mxu0 %v263
    %285 = vmatpush.msra.mxu0 %v262
    %286 = vmatpush.msra.mxu0 %v261
    %287 = vmatpush.msra.mxu0 %v260
    %288 = vmatpush.msra.mxu0 %v259
    %289 = vmatpush.msra.mxu0 %v258
    %290 = vmatpush.msra.mxu0 %v257
    %291 = vmatpush.msra.mxu0 %v256
    %292 = vmatmul.f32.gmra.mxu0 %v206
    %v293 = vpop.f32.mrf.mxu0
    %v294 = vadd.f32 %v274, %v293
    %295 = vdwg.mxu0
    %v296 = vld [vmem:[#allocation2] sm:$0xff]
    %v297 = vmul.f32 %v294, 0.5
    %v298 = vmul.f32 %v297, 1.442695
    %v299 = vpow.pop %v298
    %v300 = vmul.f32 %v296, %v299
    %v301 = vadd.f32 %v245, %v300
    %302 = vst [vmem:[%s10] sm:$0xff] %v255
    %vm303 = vcmask 64512
    %304 = vst.msk [vmem:[%s10] sm:$0xff] %vm303, %v301
    // Predicated region
    $region70: #{variational_discriminant_forward.1} parent=1 // pred_check
      _
    $region71: #{variational_discriminant_forward.1} parent=1 // pred_check_branch
      %306 = sbr.rel (0) target = $region73
    $region72: #{variational_discriminant_forward.1} parent=1 // pred_region
      _
    $region73: #{variational_discriminant_forward.1} parent=1 // pred_fallthru
      _
    // Predicated region
    $region74: #{variational_discriminant_forward.1} parent=1 // pred_check
      _
    $region75: #{variational_discriminant_forward.1} parent=1 // pred_check_branch
      %308 = sbr.rel (0) target = $region77
    $region76: #{variational_discriminant_forward.1} parent=1 // pred_region
      _
    $region77: #{variational_discriminant_forward.1} parent=1 // pred_fallthru
      _
    %309 = vsyncpa [#allocation3], 1
    %310 = vsyncpa [#allocation5], 1
    %311 = vsyncpa [#allocation8], 1
    %312 = vsyncpa [#allocation11], 1

</llo_original>
